<compile_context>
chip_gen: v7x
topology: tpu7x:2x2x1
jax: 0.10.0
libtpu: 0.0.40
codegen_flags: <defaults>
</compile_context>

<pallas_src>
import jax
import jax.numpy as jnp
from jax.experimental import pallas as pl
from jax.experimental.pallas import tpu as pltpu


def _cdiv(a, b):
    return -(-a // b)


def _round_up(x, m):
    return ((x + m - 1) // m) * m


def _decoder_kernel(x_ref, w1_ref, b1_ref, w2_ref, b2_ref, o_ref):
    # hidden = relu(x @ W1 + b1); hidden padded to 128 lanes (pad cols are 0,
    # so the result is exact).
    x = x_ref[...].astype(w1_ref.dtype)
    h = jnp.dot(x, w1_ref[...], preferred_element_type=jnp.float32)
    h = jnp.maximum(h + b1_ref[...], 0.0)
    # out = h @ W2 + b2 ; compute at 128 lanes internally, store only the
    # real d_out lanes (masked vst, but ~8x less HBM writeback).
    o = jnp.dot(h.astype(w2_ref.dtype), w2_ref[...],
                preferred_element_type=jnp.float32)
    o = o + b2_ref[...]
    d_out = o_ref.shape[-1]
    o_ref[...] = o[:, :d_out].astype(o_ref.dtype)


def prepare_decoder_params(params, *, use_bf16=False, lane_pad=128):
    """One-time prep: transpose to (in, out), reshape biases to (1, out),
    zero-pad hidden to 128 lanes (exact: relu(0)=0 flows through zero rows of
    W2).  Optionally cast weights to bf16 for the native v6e/v7x MXU path."""
    w1, b1, w2, b2 = params["w1"], params["b1"], params["w2"], params["b2"]
    hidden, d_in = w1.shape          # (64, d_in)
    d_out = w2.shape[0]              # 2 * s_dim
    hp = _round_up(hidden, lane_pad)   # 128 — deliberately NOT 256
    op = _round_up(d_out, lane_pad)    # internal compute width (128)
    w_dtype = jnp.bfloat16 if use_bf16 else jnp.float32

    w1_t = (jnp.zeros((d_in, hp), jnp.float32)
            .at[:, :hidden].set(w1.T).astype(w_dtype))
    b1_p = jnp.zeros((1, hp), jnp.float32).at[0, :hidden].set(b1)
    w2_t = (jnp.zeros((hp, op), jnp.float32)
            .at[:hidden, :d_out].set(w2.T).astype(w_dtype))
    b2_p = jnp.zeros((1, op), jnp.float32).at[0, :d_out].set(b2)

    return {
        "w1_t": w1_t,          # (d_in, 128)
        "b1": b1_p,            # (1, 128) f32
        "w2_t": w2_t,          # (128, 128)
        "b2": b2_p,            # (1, 128) f32
        "d_out": int(d_out),   # static metadata
    }


def _choose_block_b(B, max_block_b):
    # Tiny batches: a single grid step (wall time is launch/overhead bound).
    if B < 256:
        return _round_up(B, 8)
    # Otherwise: at least 2 tiles so the "parallel" grid axis can shard across
    # v7x's two TensorCores, and a tile size chosen so batch padding waste
    # stays below 8 rows per tile.
    n_tiles = max(2, _cdiv(B, max_block_b))
    return _round_up(_cdiv(B, n_tiles), 8)


def decoder_forward(saz, prep, *, max_block_b=4096):
    """saz: (B, s_dim+a_dim+z_dim) float32 -> (B, 2*s_dim) float32."""
    w1_t, b1_p, w2_t, b2_p = prep["w1_t"], prep["b1"], prep["w2_t"], prep["b2"]
    d_out = prep["d_out"]

    B, d_in = saz.shape
    hp = w1_t.shape[1]    # 128
    op = w2_t.shape[1]    # 128 (internal compute width)

    block_b = _choose_block_b(B, max_block_b)
    b_pad = _round_up(B, block_b)
    x = saz if b_pad == B else jnp.pad(saz, ((0, b_pad - B), (0, 0)))
    grid = (b_pad // block_b,)

    w_bytes = (w1_t.size * w1_t.dtype.itemsize
               + w2_t.size * w2_t.dtype.itemsize
               + b1_p.size * 4 + b2_p.size * 4)
    cost = pl.CostEstimate(
        flops=2 * b_pad * d_in * hp + 2 * b_pad * hp * op,
        transcendentals=0,
        bytes_accessed=4 * b_pad * (d_in + d_out) + w_bytes,
    )

    out_padded = pl.pallas_call(
        _decoder_kernel,
        out_shape=jax.ShapeDtypeStruct((b_pad, d_out), saz.dtype),
        grid_spec=pltpu.PrefetchScalarGridSpec(
            num_scalar_prefetch=0,
            grid=grid,
            in_specs=[
                # Batch tile of the input (d_in equals the full last dim).
                pl.BlockSpec((block_b, d_in), lambda i: (i, 0)),
                # Weights / biases: full arrays, resident across the grid
                # (constant index_map; single-buffering them would only save
                #  ~72 KiB VMEM so we keep the default pipelining).
                pl.BlockSpec((d_in, hp), lambda i: (0, 0)),
                pl.BlockSpec((1, hp), lambda i: (0, 0)),
                pl.BlockSpec((hp, op), lambda i: (0, 0)),
                pl.BlockSpec((1, op), lambda i: (0, 0)),
            ],
            # Un-padded output block: d_out equals the full last dim, so this
            # is legal and cuts HBM writeback ~8x vs a 128-lane padded output.
            out_specs=pl.BlockSpec((block_b, d_out), lambda i: (i, 0)),
        ),
        compiler_params=pltpu.CompilerParams(
            dimension_semantics=("parallel",),
        ),
        cost_estimate=cost,
    )(x, w1_t, b1_p, w2_t, b2_p)

    # No-op (removed by jit) when b_pad == B, e.g. any B that is already a
    # multiple of 8 and < 256 — so small-batch latency has no flanking slice.
    return out_padded if b_pad == B else out_padded[:B]


def init_decoder_params(key, s_dim, a_dim, z_dim):
    """Deterministic init mimicking torch.nn.Linear (uniform +-1/sqrt(fan_in))."""
    d_in = s_dim + a_dim + z_dim
    hidden = 64
    d_out = 2 * s_dim
    k1, k2, k3, k4 = jax.random.split(key, 4)
    lim1 = 1.0 / jnp.sqrt(jnp.float32(d_in))
    lim2 = 1.0 / jnp.sqrt(jnp.float32(hidden))
    return {
        "w1": jax.random.uniform(k1, (hidden, d_in), jnp.float32, -lim1, lim1),
        "b1": jax.random.uniform(k2, (hidden,), jnp.float32, -lim1, lim1),
        "w2": jax.random.uniform(k3, (d_out, hidden), jnp.float32, -lim2, lim2),
        "b2": jax.random.uniform(k4, (d_out,), jnp.float32, -lim2, lim2),
    }


def decoder_reference(saz, params):
    h = jnp.maximum(saz @ params["w1"].T + params["b1"], 0.0)
    return h @ params["w2"].T + params["b2"]


if __name__ == "__main__":
    s_dim, a_dim, z_dim = 8, 4, 4      # D_in = 16, D_out = 16
    d_in = s_dim + a_dim + z_dim

    key = jax.random.PRNGKey(0)
    k_params, k_x, k_x2 = jax.random.split(key, 3)
    params = init_decoder_params(k_params, s_dim, a_dim, z_dim)

    # --- small batch, single grid step, f32-weight path -------------------
    B = 64
    saz = jax.random.normal(k_x, (B, d_in), jnp.float32)
    prep_f32 = prepare_decoder_params(params, use_bf16=False)
    fwd_f32 = jax.jit(lambda x: decoder_forward(x, prep_f32))
    out = jax.block_until_ready(fwd_f32(saz))
    ref = decoder_reference(saz, params)
    assert out.shape == (B, 2 * s_dim)
    assert jnp.allclose(out, ref, atol=1e-2, rtol=1e-2)

    # --- larger batch: >=2 grid tiles (v7x megacore path) + batch padding --
    B2 = 300
    saz2 = jax.random.normal(k_x2, (B2, d_in), jnp.float32)
    out2 = jax.block_until_ready(fwd_f32(saz2))
    ref2 = decoder_reference(saz2, params)
    assert out2.shape == (B2, 2 * s_dim)
    assert jnp.allclose(out2, ref2, atol=1e-2, rtol=1e-2)

    # --- bf16-weight path (native v6e/v7x MXU, f32 accumulation) ----------
    prep_bf16 = prepare_decoder_params(params, use_bf16=True)
    fwd_bf16 = jax.jit(lambda x: decoder_forward(x, prep_bf16))
    out3 = jax.block_until_ready(fwd_bf16(saz))
    assert out3.shape == (B, 2 * s_dim)
    assert jnp.allclose(out3, ref, atol=3e-2, rtol=3e-2)

    print("KERNEL_OK")
</pallas_src>

<mosaic_0001>
module attributes {stable_mosaic.version = 11 : i64} {
  func.func @_decoder_kernel(%arg0: i32, %arg1: memref<64x16xf32, #tpu.memory_space<vmem>>, %arg2: memref<16x128xf32, #tpu.memory_space<vmem>>, %arg3: memref<1x128xf32, #tpu.memory_space<vmem>>, %arg4: memref<128x128xf32, #tpu.memory_space<vmem>>, %arg5: memref<1x128xf32, #tpu.memory_space<vmem>>, %arg6: memref<64x16xf32, #tpu.memory_space<vmem>>) attributes {dimension_semantics = [#tpu.dimension_semantics<parallel>], iteration_bounds = array<i64: 1>, scalar_prefetch = 0 : i64, scratch_operands = 0 : i64, tpu.core_type = #tpu.core_type<tc>, window_params = [{transform_indices = @transform_0, window_bounds = array<i64: 64, 16>}, {pipeline_mode = #tpu.pipeline_mode<synchronous>, transform_indices = @transform_1, window_bounds = array<i64: 16, 128>}, {pipeline_mode = #tpu.pipeline_mode<synchronous>, transform_indices = @transform_2, window_bounds = array<i64: 1, 128>}, {pipeline_mode = #tpu.pipeline_mode<synchronous>, transform_indices = @transform_3, window_bounds = array<i64: 128, 128>}, {pipeline_mode = #tpu.pipeline_mode<synchronous>, transform_indices = @transform_4, window_bounds = array<i64: 1, 128>}, {transform_indices = @transform_5, window_bounds = array<i64: 64, 16>}]} {
    %c0 = arith.constant 0 : index
    %c0_0 = arith.constant 0 : index
    %0 = vector.load %arg1[%c0, %c0_0] : memref<64x16xf32, #tpu.memory_space<vmem>>, vector<64x16xf32>
    %c0_1 = arith.constant 0 : index
    %c0_2 = arith.constant 0 : index
    %1 = vector.load %arg2[%c0_1, %c0_2] : memref<16x128xf32, #tpu.memory_space<vmem>>, vector<16x128xf32>
    %cst = arith.constant dense<0.000000e+00> : vector<64x128xf32>
    %2 = tpu.matmul %0, %1, %cst {dimension_numbers = #tpu.dot_dimension_numbers<[1], [0], [0], [1], [0, 0, 1, 1], [], []>} : vector<64x16xf32>, vector<16x128xf32>, vector<64x128xf32> -> vector<64x128xf32>
    %c0_3 = arith.constant 0 : index
    %c0_4 = arith.constant 0 : index
    %3 = vector.load %arg3[%c0_3, %c0_4] : memref<1x128xf32, #tpu.memory_space<vmem>>, vector<1x128xf32>
    %4 = vector.broadcast %3 : vector<1x128xf32> to vector<64x128xf32>
    %5 = arith.addf %2, %4 : vector<64x128xf32>
    %cst_5 = arith.constant 0.000000e+00 : f32
    %6 = vector.broadcast %cst_5 : f32 to vector<64x128xf32>
    %7 = arith.maximumf %5, %6 : vector<64x128xf32>
    %c0_6 = arith.constant 0 : index
    %c0_7 = arith.constant 0 : index
    %8 = vector.load %arg4[%c0_6, %c0_7] : memref<128x128xf32, #tpu.memory_space<vmem>>, vector<128x128xf32>
    %cst_8 = arith.constant dense<0.000000e+00> : vector<64x128xf32>
    %9 = tpu.matmul %7, %8, %cst_8 {dimension_numbers = #tpu.dot_dimension_numbers<[1], [0], [0], [1], [0, 0, 1, 1], [], []>} : vector<64x128xf32>, vector<128x128xf32>, vector<64x128xf32> -> vector<64x128xf32>
    %c0_9 = arith.constant 0 : index
    %c0_10 = arith.constant 0 : index
    %10 = vector.load %arg5[%c0_9, %c0_10] : memref<1x128xf32, #tpu.memory_space<vmem>>, vector<1x128xf32>
    %11 = vector.broadcast %10 : vector<1x128xf32> to vector<64x128xf32>
    %12 = arith.addf %9, %11 : vector<64x128xf32>
    %13 = vector.extract_strided_slice %12 {offsets = [0, 0], sizes = [64, 16], strides = [1, 1]} : vector<64x128xf32> to vector<64x16xf32>
    %c0_11 = arith.constant 0 : index
    %c0_12 = arith.constant 0 : index
    %14 = vector.load %arg6[%c0_11, %c0_12] : memref<64x16xf32, #tpu.memory_space<vmem>>, vector<64x16xf32>
    tpu.vector_store %arg6[%c0_11, %c0_12], %13 {strides = array<i32>} : memref<64x16xf32, #tpu.memory_space<vmem>>, vector<64x16xf32>,
    return
  }
  func.func @transform_0(%arg0: i32) -> (i32, i32) {
    %c0_i32 = arith.constant 0 : i32
    %c0_i32_0 = arith.constant 0 : i32
    return %arg0, %c0_i32 : i32, i32
  }
  func.func @transform_1(%arg0: i32) -> (i32, i32) {
    %c0_i32 = arith.constant 0 : i32
    %c0_i32_0 = arith.constant 0 : i32
    %c0_i32_1 = arith.constant 0 : i32
    return %c0_i32, %c0_i32_0 : i32, i32
  }
  func.func @transform_2(%arg0: i32) -> (i32, i32) {
    %c0_i32 = arith.constant 0 : i32
    %c0_i32_0 = arith.constant 0 : i32
    %c0_i32_1 = arith.constant 0 : i32
    return %c0_i32, %c0_i32_0 : i32, i32
  }
  func.func @transform_3(%arg0: i32) -> (i32, i32) {
    %c0_i32 = arith.constant 0 : i32
    %c0_i32_0 = arith.constant 0 : i32
    %c0_i32_1 = arith.constant 0 : i32
    return %c0_i32, %c0_i32_0 : i32, i32
  }
  func.func @transform_4(%arg0: i32) -> (i32, i32) {
    %c0_i32 = arith.constant 0 : i32
    %c0_i32_0 = arith.constant 0 : i32
    %c0_i32_1 = arith.constant 0 : i32
    return %c0_i32, %c0_i32_0 : i32, i32
  }
  func.func @transform_5(%arg0: i32) -> (i32, i32) {
    %c0_i32 = arith.constant 0 : i32
    %c0_i32_0 = arith.constant 0 : i32
    return %arg0, %c0_i32 : i32, i32
  }
}

</mosaic_0001>

<llo_original>
// kernel: _lambda_.1
$region0: #{_lambda_.1}
  #allocation0 [shape = 'u32[]', space=smem, size = 0x4, offset = 0x4, fixed_abs, tag = 'smem constant byte address 0x4 - core index']
  #allocation1 [shape = 'u32[144,128]{1,0:T(1,128)}', space=vmem, size = 0x12000, scoped, tag = 'internal scratch']
  %s0 = inlined_call_operand.vmem [shape: f32[64,16], index: 0, kind: input, shape index: {}]
  %s1 = inlined_call_operand.vmem [shape: f32[16,128], index: 1, kind: input, shape index: {}]
  %s2 = inlined_call_operand.vmem [shape: f32[1,128], index: 2, kind: input, shape index: {}]
  %s3 = inlined_call_operand.hbm [shape: f32[128,128], index: 3, kind: input, shape index: {}]
  %s4 = inlined_call_operand.vmem [shape: f32[1,128], index: 4, kind: input, shape index: {}]
  %s5 = inlined_call_operand.vmem [shape: f32[64,16], index: 5, kind: output, shape index: {}]
  %s6 = sld [smem:[#allocation0]]
  $region34: #{_lambda_.1} parent=0
    _
  %s8 = ssub.s32 1, %s6
  %s9 = scalar_select 0, %s8, %s6
  $region1: #{_lambda_.1} parent=0
    #allocation2 [shape = 'u8[65536]{0}', space=vmem, size = 0x10000, scoped, tag = 'input window, operand 3, single buffered']
    #allocation3 [shape = 's32[1]{0}', space=sflag, size = 0x4, scoped, tag = 'scoped memory for _lambda_.1']
    %10 = vsyncpa [#allocation3], 0
    // Predicated region
    $region2: #{_lambda_.1} parent=1 // pred_check
      _
    $region3: #{_lambda_.1} parent=1 // pred_check_branch
      %12 = sbr.rel (0) target = $region5
    $region4: #{_lambda_.1} parent=1 // pred_region
      _
    $region5: #{_lambda_.1} parent=1 // pred_fallthru
      _
    // Predicated region
    $region6: #{_lambda_.1} parent=1 // pred_check
      _
    $region7: #{_lambda_.1} parent=1 // pred_check_branch
      %14 = sbr.rel (0) target = $region9
    $region8: #{_lambda_.1} parent=1 // pred_region
      _
    $region9: #{_lambda_.1} parent=1 // pred_fallthru
      _
    // Predicated region
    $region10: #{_lambda_.1} parent=1 // pred_check
      _
    $region11: #{_lambda_.1} parent=1 // pred_check_branch
      %16 = sbr.rel (0) target = $region13
    $region12: #{_lambda_.1} parent=1 // pred_region
      _
    $region13: #{_lambda_.1} parent=1 // pred_fallthru
      _
    // Predicated region
    $region14: #{_lambda_.1} parent=1 // pred_check
      _
    $region15: #{_lambda_.1} parent=1 // pred_check_branch
      %18 = sbr.rel (0) target = $region17
    $region16: #{_lambda_.1} parent=1 // pred_region
      %s20 = ssub.s32 2048, 2048
      %21 = vsyncadd [#allocation3], %s20
      %s22 = sshll.u32 [#allocation2], 4
      %s23 = int_to_ptr.vmem [resolvable:$true] %s22
      %28 = dma.hbm_to_vmem [thread:$0]  %s3, 2048, %s23, [#allocation3], 128, 128, 8
    $region17: #{_lambda_.1} parent=1 // pred_fallthru
      _
    // Predicated region
    $region18: #{_lambda_.1} parent=1 // pred_check
      _
    $region19: #{_lambda_.1} parent=1 // pred_check_branch
      %30 = sbr.rel (0) target = $region21
    $region20: #{_lambda_.1} parent=1 // pred_region
      _
    $region21: #{_lambda_.1} parent=1 // pred_fallthru
      _
    // Predicated region
    $region22: #{_lambda_.1} parent=1 // pred_check
      _
    $region23: #{_lambda_.1} parent=1 // pred_check_branch
      %32 = sbr.rel (0) target = $region25
    $region24: #{_lambda_.1} parent=1 // pred_region
      %33 = dma.done [#allocation3], 2048
    $region25: #{_lambda_.1} parent=1 // pred_fallthru
      _
    %v34 = vld [vmem:[%s0] sm:$0xff]
    %v35 = vld [vmem:[%s0 + $0x8] sm:$0xff]
    %v36 = vld [vmem:[%s0 + $0x10] sm:$0xff]
    %v37 = vld [vmem:[%s0 + $0x18] sm:$0xff]
    %v38 = vld [vmem:[%s0 + $0x20] sm:$0xff]
    %v39 = vld [vmem:[%s0 + $0x28] sm:$0xff]
    %v40 = vld [vmem:[%s0 + $0x30] sm:$0xff]
    %v41 = vld [vmem:[%s0 + $0x38] sm:$0xff]
    %v42 = vld [vmem:[%s1] sm:$0xff]
    %v43 = vld [vmem:[%s1 + $0x8] sm:$0xff]
    %v44 = vld [vmem:[%s2] sm:$0x1]
    %v46 = vlaneseq
    %v47 = vshrl.u32 %v46, 7
    %v48 = vsub.s32 0, %v47
    %v49 = vrot.slane %v44, %v48
    %vm51 = vcmask 130048
    %v53 = vsel %vm51, %v34, 0
    %v56 = vsel %vm51, %v35, 0
    %v59 = vsel %vm51, %v36, 0
    %v62 = vsel %vm51, %v37, 0
    %v65 = vsel %vm51, %v38, 0
    %v68 = vsel %vm51, %v39, 0
    %v71 = vsel %vm51, %v40, 0
    %v74 = vsel %vm51, %v41, 0
    %76 = vmatprep.subr.mxu0 0.0
    %77 = vmatpush1.msra.mxu0 %v42
    %78 = vmatprep.subr.mxu0 0.0
    %79 = vmatpush1.msra.mxu0 %v43
    %80 = vmatprep.subr.mxu0 0.0
    %81 = vmatpush1.msra.mxu0 0.0
    %82 = vmatprep.subr.mxu0 0.0
    %83 = vmatpush1.msra.mxu0 0.0
    %84 = vmatprep.subr.mxu0 0.0
    %85 = vmatpush1.msra.mxu0 0.0
    %86 = vmatprep.subr.mxu0 0.0
    %87 = vmatpush1.msra.mxu0 0.0
    %88 = vmatprep.subr.mxu0 0.0
    %89 = vmatpush1.msra.mxu0 0.0
    %90 = vmatprep.subr.mxu0 0.0
    %91 = vmatpush1.msra.mxu0 0.0
    %92 = vmatprep.subr.mxu0 0.0
    %93 = vmatpush1.msra.mxu0 0.0
    %94 = vmatprep.subr.mxu0 0.0
    %95 = vmatpush1.msra.mxu0 0.0
    %96 = vmatprep.subr.mxu0 0.0
    %97 = vmatpush1.msra.mxu0 0.0
    %98 = vmatprep.subr.mxu0 0.0
    %99 = vmatpush1.msra.mxu0 0.0
    %100 = vmatprep.subr.mxu0 0.0
    %101 = vmatpush1.msra.mxu0 0.0
    %102 = vmatprep.subr.mxu0 0.0
    %103 = vmatpush1.msra.mxu0 0.0
    %104 = vmatprep.subr.mxu0 0.0
    %105 = vmatpush1.msra.mxu0 0.0
    %106 = vmatprep.subr.mxu0 0.0
    %107 = vmatpush1.msra.mxu0 0.0
    %108 = vmatprep.subr.mxu0 0.0
    %109 = vmatpush1.msra.mxu0 0.0
    %110 = vmatprep.subr.mxu0 0.0
    %111 = vmatpush1.msra.mxu0 0.0
    %112 = vmatprep.subr.mxu0 0.0
    %113 = vmatpush1.msra.mxu0 0.0
    %114 = vmatprep.subr.mxu0 0.0
    %115 = vmatpush1.msra.mxu0 0.0
    %116 = vmatprep.subr.mxu0 0.0
    %117 = vmatpush1.msra.mxu0 0.0
    %118 = vmatprep.subr.mxu0 0.0
    %119 = vmatpush1.msra.mxu0 0.0
    %120 = vmatprep.subr.mxu0 0.0
    %121 = vmatpush1.msra.mxu0 0.0
    %122 = vmatprep.subr.mxu0 0.0
    %123 = vmatpush1.msra.mxu0 0.0
    %124 = vmatprep.subr.mxu0 0.0
    %125 = vmatpush1.msra.mxu0 0.0
    %126 = vmatprep.subr.mxu0 0.0
    %127 = vmatpush1.msra.mxu0 0.0
    %128 = vmatprep.subr.mxu0 0.0
    %129 = vmatpush1.msra.mxu0 0.0
    %130 = vmatprep.subr.mxu0 0.0
    %131 = vmatpush1.msra.mxu0 0.0
    %132 = vmatprep.subr.mxu0 0.0
    %133 = vmatpush1.msra.mxu0 0.0
    %134 = vmatprep.subr.mxu0 0.0
    %135 = vmatpush1.msra.mxu0 0.0
    %136 = vmatprep.subr.mxu0 0.0
    %137 = vmatpush1.msra.mxu0 0.0
    %138 = vmatprep.subr.mxu0 0.0
    %139 = vmatpush1.msra.mxu0 0.0
    %140 = vmatprep.mubr.f32.mxu0 0.0
    %141 = vmatmul.mubr.f32.gmra.mrb[0].mxu0 %v53
    %v142 = vpop.f32.mrb[0].mxu0
    %v143 = vadd.f32 %v49, %v142
    %v144 = vpop.f32.mrb[0].mxu0
    %145 = vmatprep.mubr.f32.mxu0 0.0
    %146 = vmatmul.mubr.f32.gmra.mrb[0].mxu0 %v56
    %v147 = vpop.f32.mrb[0].mxu0
    %v148 = vadd.f32 %v49, %v147
    %v149 = vpop.f32.mrb[0].mxu0
    %150 = vmatprep.mubr.f32.mxu0 0.0
    %151 = vmatmul.mubr.f32.gmra.mrb[0].mxu0 %v59
    %v152 = vpop.f32.mrb[0].mxu0
    %v153 = vadd.f32 %v49, %v152
    %v154 = vpop.f32.mrb[0].mxu0
    %155 = vmatprep.mubr.f32.mxu0 0.0
    %156 = vmatmul.mubr.f32.gmra.mrb[0].mxu0 %v62
    %v157 = vpop.f32.mrb[0].mxu0
    %v158 = vadd.f32 %v49, %v157
    %v159 = vpop.f32.mrb[0].mxu0
    %160 = vmatprep.mubr.f32.mxu0 0.0
    %161 = vmatmul.mubr.f32.gmra.mrb[0].mxu0 %v65
    %v162 = vpop.f32.mrb[0].mxu0
    %v163 = vadd.f32 %v49, %v162
    %v164 = vpop.f32.mrb[0].mxu0
    %165 = vmatprep.mubr.f32.mxu0 0.0
    %166 = vmatmul.mubr.f32.gmra.mrb[0].mxu0 %v68
    %v167 = vpop.f32.mrb[0].mxu0
    %v168 = vadd.f32 %v49, %v167
    %v169 = vpop.f32.mrb[0].mxu0
    %170 = vmatprep.mubr.f32.mxu0 0.0
    %171 = vmatmul.mubr.f32.gmra.mrb[0].mxu0 %v71
    %v172 = vpop.f32.mrb[0].mxu0
    %v173 = vadd.f32 %v49, %v172
    %v174 = vpop.f32.mrb[0].mxu0
    %175 = vmatprep.mubr.f32.mxu0 0.0
    %176 = vmatmul.mubr.f32.gmra.mrb[0].mxu0 %v74
    %v177 = vpop.f32.mrb[0].mxu0
    %v178 = vadd.f32 %v49, %v177
    %v179 = vpop.f32.mrb[0].mxu0
    %180 = vdwg.mxu0
    %v181 = vmax.f32 %v143, 0.0
    %v182 = vmax.f32 %v148, 0.0
    %v183 = vmax.f32 %v153, 0.0
    %v184 = vmax.f32 %v158, 0.0
    %v185 = vmax.f32 %v163, 0.0
    %v186 = vmax.f32 %v168, 0.0
    %v187 = vmax.f32 %v173, 0.0
    %v188 = vmax.f32 %v178, 0.0
    %v189 = vld [vmem:[#allocation2] sm:$0xff]
    %v190 = vld [vmem:[#allocation2 + $0x8] sm:$0xff]
    %v191 = vld [vmem:[#allocation2 + $0x10] sm:$0xff]
    %v192 = vld [vmem:[#allocation2 + $0x18] sm:$0xff]
    %v193 = vld [vmem:[#allocation2 + $0x20] sm:$0xff]
    %v194 = vld [vmem:[#allocation2 + $0x28] sm:$0xff]
    %v195 = vld [vmem:[#allocation2 + $0x30] sm:$0xff]
    %v196 = vld [vmem:[#allocation2 + $0x38] sm:$0xff]
    %v197 = vld [vmem:[#allocation2 + $0x40] sm:$0xff]
    %v198 = vld [vmem:[#allocation2 + $0x48] sm:$0xff]
    %v199 = vld [vmem:[#allocation2 + $0x50] sm:$0xff]
    %v200 = vld [vmem:[#allocation2 + $0x58] sm:$0xff]
    %v201 = vld [vmem:[#allocation2 + $0x60] sm:$0xff]
    %v202 = vld [vmem:[#allocation2 + $0x68] sm:$0xff]
    %v203 = vld [vmem:[#allocation2 + $0x70] sm:$0xff]
    %v204 = vld [vmem:[#allocation2 + $0x78] sm:$0xff]
    %v205 = vld [vmem:[%s4] sm:$0x1]
    %v207 = vlaneseq
    %v208 = vshrl.u32 %v207, 7
    %v209 = vsub.s32 0, %v208
    %v210 = vrot.slane %v205, %v209
    %212 = vmatprep.subr.mxu0 0.0
    %213 = vmatpush1.msra.mxu0 %v189
    %214 = vmatprep.subr.mxu0 0.0
    %215 = vmatpush1.msra.mxu0 %v190
    %216 = vmatprep.subr.mxu0 0.0
    %217 = vmatpush1.msra.mxu0 %v191
    %218 = vmatprep.subr.mxu0 0.0
    %219 = vmatpush1.msra.mxu0 %v192
    %220 = vmatprep.subr.mxu0 0.0
    %221 = vmatpush1.msra.mxu0 %v193
    %222 = vmatprep.subr.mxu0 0.0
    %223 = vmatpush1.msra.mxu0 %v194
    %224 = vmatprep.subr.mxu0 0.0
    %225 = vmatpush1.msra.mxu0 %v195
    %226 = vmatprep.subr.mxu0 0.0
    %227 = vmatpush1.msra.mxu0 %v196
    %228 = vmatprep.subr.mxu0 0.0
    %229 = vmatpush1.msra.mxu0 %v197
    %230 = vmatprep.subr.mxu0 0.0
    %231 = vmatpush1.msra.mxu0 %v198
    %232 = vmatprep.subr.mxu0 0.0
    %233 = vmatpush1.msra.mxu0 %v199
    %234 = vmatprep.subr.mxu0 0.0
    %235 = vmatpush1.msra.mxu0 %v200
    %236 = vmatprep.subr.mxu0 0.0
    %237 = vmatpush1.msra.mxu0 %v201
    %238 = vmatprep.subr.mxu0 0.0
    %239 = vmatpush1.msra.mxu0 %v202
    %240 = vmatprep.subr.mxu0 0.0
    %241 = vmatpush1.msra.mxu0 %v203
    %242 = vmatprep.subr.mxu0 0.0
    %243 = vmatpush1.msra.mxu0 %v204
    %244 = vmatprep.subr.mxu0 0.0
    %245 = vmatpush1.msra.mxu0 0.0
    %246 = vmatprep.subr.mxu0 0.0
    %247 = vmatpush1.msra.mxu0 0.0
    %248 = vmatprep.subr.mxu0 0.0
    %249 = vmatpush1.msra.mxu0 0.0
    %250 = vmatprep.subr.mxu0 0.0
    %251 = vmatpush1.msra.mxu0 0.0
    %252 = vmatprep.subr.mxu0 0.0
    %253 = vmatpush1.msra.mxu0 0.0
    %254 = vmatprep.subr.mxu0 0.0
    %255 = vmatpush1.msra.mxu0 0.0
    %256 = vmatprep.subr.mxu0 0.0
    %257 = vmatpush1.msra.mxu0 0.0
    %258 = vmatprep.subr.mxu0 0.0
    %259 = vmatpush1.msra.mxu0 0.0
    %260 = vmatprep.subr.mxu0 0.0
    %261 = vmatpush1.msra.mxu0 0.0
    %262 = vmatprep.subr.mxu0 0.0
    %263 = vmatpush1.msra.mxu0 0.0
    %264 = vmatprep.subr.mxu0 0.0
    %265 = vmatpush1.msra.mxu0 0.0
    %266 = vmatprep.subr.mxu0 0.0
    %267 = vmatpush1.msra.mxu0 0.0
    %268 = vmatprep.subr.mxu0 0.0
    %269 = vmatpush1.msra.mxu0 0.0
    %270 = vmatprep.subr.mxu0 0.0
    %271 = vmatpush1.msra.mxu0 0.0
    %272 = vmatprep.subr.mxu0 0.0
    %273 = vmatpush1.msra.mxu0 0.0
    %274 = vmatprep.subr.mxu0 0.0
    %275 = vmatpush1.msra.mxu0 0.0
    %276 = vmatprep.mubr.f32.mxu0 0.0
    %277 = vmatmul.mubr.f32.gmra.mrb[0].mxu0 %v181
    %v278 = vpop.f32.mrb[0].mxu0
    %v279 = vadd.f32 %v210, %v278
    %v280 = vpop.f32.mrb[0].mxu0
    %281 = vmatprep.mubr.f32.mxu0 0.0
    %282 = vmatmul.mubr.f32.gmra.mrb[0].mxu0 %v182
    %v283 = vpop.f32.mrb[0].mxu0
    %v284 = vadd.f32 %v210, %v283
    %v285 = vpop.f32.mrb[0].mxu0
    %286 = vmatprep.mubr.f32.mxu0 0.0
    %287 = vmatmul.mubr.f32.gmra.mrb[0].mxu0 %v183
    %v288 = vpop.f32.mrb[0].mxu0
    %v289 = vadd.f32 %v210, %v288
    %v290 = vpop.f32.mrb[0].mxu0
    %291 = vmatprep.mubr.f32.mxu0 0.0
    %292 = vmatmul.mubr.f32.gmra.mrb[0].mxu0 %v184
    %v293 = vpop.f32.mrb[0].mxu0
    %v294 = vadd.f32 %v210, %v293
    %v295 = vpop.f32.mrb[0].mxu0
    %296 = vmatprep.mubr.f32.mxu0 0.0
    %297 = vmatmul.mubr.f32.gmra.mrb[0].mxu0 %v185
    %v298 = vpop.f32.mrb[0].mxu0
    %v299 = vadd.f32 %v210, %v298
    %v300 = vpop.f32.mrb[0].mxu0
    %301 = vmatprep.mubr.f32.mxu0 0.0
    %302 = vmatmul.mubr.f32.gmra.mrb[0].mxu0 %v186
    %v303 = vpop.f32.mrb[0].mxu0
    %v304 = vadd.f32 %v210, %v303
    %v305 = vpop.f32.mrb[0].mxu0
    %306 = vmatprep.mubr.f32.mxu0 0.0
    %307 = vmatmul.mubr.f32.gmra.mrb[0].mxu0 %v187
    %v308 = vpop.f32.mrb[0].mxu0
    %v309 = vadd.f32 %v210, %v308
    %v310 = vpop.f32.mrb[0].mxu0
    %311 = vmatprep.mubr.f32.mxu0 0.0
    %312 = vmatmul.mubr.f32.gmra.mrb[0].mxu0 %v188
    %v313 = vpop.f32.mrb[0].mxu0
    %v314 = vadd.f32 %v210, %v313
    %v315 = vpop.f32.mrb[0].mxu0
    %316 = vdwg.mxu0
    %317 = vst.msk [vmem:[%s5] sm:$0xff] %vm51, %v279
    %318 = vst.msk [vmem:[%s5 + $0x8] sm:$0xff] %vm51, %v284
    %319 = vst.msk [vmem:[%s5 + $0x10] sm:$0xff] %vm51, %v289
    %320 = vst.msk [vmem:[%s5 + $0x18] sm:$0xff] %vm51, %v294
    %321 = vst.msk [vmem:[%s5 + $0x20] sm:$0xff] %vm51, %v299
    %322 = vst.msk [vmem:[%s5 + $0x28] sm:$0xff] %vm51, %v304
    %323 = vst.msk [vmem:[%s5 + $0x30] sm:$0xff] %vm51, %v309
    %324 = vst.msk [vmem:[%s5 + $0x38] sm:$0xff] %vm51, %v314
    // Predicated region
    $region26: #{_lambda_.1} parent=1 // pred_check
      _
    $region27: #{_lambda_.1} parent=1 // pred_check_branch
      %326 = sbr.rel (0) target = $region29
    $region28: #{_lambda_.1} parent=1 // pred_region
      _
    $region29: #{_lambda_.1} parent=1 // pred_fallthru
      _
    // Predicated region
    $region30: #{_lambda_.1} parent=1 // pred_check
      _
    $region31: #{_lambda_.1} parent=1 // pred_check_branch
      %328 = sbr.rel (0) target = $region33
    $region32: #{_lambda_.1} parent=1 // pred_region
      _
    $region33: #{_lambda_.1} parent=1 // pred_fallthru
      _
    %329 = vsyncpa [#allocation3], 1

</llo_original>
